<compile_context>
chip_gen: v7x
topology: tpu7x:2x2x1
jax: 0.10.0
libtpu: 0.0.40
codegen_flags: <defaults>
</compile_context>

<pallas_src>
import jax
import jax.numpy as jnp
from jax.experimental import pallas as pl
from jax.experimental.pallas import tpu as pltpu

# logical sizes (PyTorch module)
N_STATES = 6
N_ACTIONS = 4
H_FEAT = 100      # feature hidden
H_ADV = 100       # advantage hidden
H_VAL = 500       # value hidden

# padded, TPU-tile-friendly sizes
S_PAD = 8                 # states   6   -> 8
H1 = 128                  # feature  100 -> 128
HA = 128                  # adv hid  100 -> 128
HV = 512                  # val hid  500 -> 512
H_CAT = HA + HV           # 640: fused (advantage | value) first-layer width
A_PAD = 128               # actions  4   -> 128 (lane-dense output)

W_ROWS = S_PAD + H1 + HA  # 8 + 128 + 128 = 264 rows in the weight slab

# weight-slab row offsets
_W1_R0 = 0                # [0:8,     0:128]  feature weight
_WCAT_R0 = S_PAD          # [8:136,   0:640]  fused (wa1 | wv1)
_WA2_R0 = S_PAD + H1      # [136:264, 0:128]  advantage output weight

# bias / vector slab rows
_B1_ROW = 0               # [0:128] feature bias
_BCAT_ROW = 1             # [0:640] fused (ba1 | bv1) bias
_BA2_ROW = 2              # [0:128] advantage output bias
_WV2_ROW = 3              # [0:512] value output weight, stored as a row -> VPU reduce
_BV2_ROW = 4              # [0:1]   value output bias


def net_kernel(x_ref, w_ref, v_ref, q_ref, adv_ref):
    # x_ref : [TILE_B, 8]      padded states
    # w_ref : [264, 640]       weight slab (VMEM-resident across grid steps)
    # v_ref : [8, 640]         bias / value-row slab
    # q_ref : [TILE_B, 128]    val + adv (padded lanes), NOT mean-subtracted
    # adv_ref:[TILE_B, 128]    adv (padded lanes are exactly 0)
    x = x_ref[...]

    w1 = w_ref[_W1_R0:_W1_R0 + S_PAD, 0:H1]           # [8, 128]
    wcat = w_ref[_WCAT_R0:_WCAT_R0 + H1, :]           # [128, 640]
    wa2 = w_ref[_WA2_R0:_WA2_R0 + HA, 0:A_PAD]        # [128, 128]

    b1 = v_ref[_B1_ROW:_B1_ROW + 1, 0:H1]             # [1, 128]
    bcat = v_ref[_BCAT_ROW:_BCAT_ROW + 1, :]          # [1, 640]
    ba2 = v_ref[_BA2_ROW:_BA2_ROW + 1, 0:A_PAD]       # [1, 128]
    wv2 = v_ref[_WV2_ROW:_WV2_ROW + 1, 0:HV]          # [1, 512]
    bv2 = v_ref[_BV2_ROW:_BV2_ROW + 1, 0:1]           # [1, 1]

    # feature: Linear(6,100) + ReLU  (padded to 8 -> 128)
    h = jnp.maximum(jnp.dot(x, w1, preferred_element_type=jnp.float32) + b1, 0.0)

    # fused first layers of both branches: one [128,640] matmul instead of two
    hv = jnp.maximum(jnp.dot(h, wcat, preferred_element_type=jnp.float32) + bcat, 0.0)
    a1 = hv[:, 0:HA]           # advantage hidden  [TILE_B, 128]
    v1 = hv[:, HA:H_CAT]       # value hidden      [TILE_B, 512]

    # advantage head: Linear(100,4) padded to 128 lanes (lanes 4:128 are exactly 0)
    adv = jnp.dot(a1, wa2, preferred_element_type=jnp.float32) + ba2       # [TILE_B, 128]

    # value head: Linear(500,1) as VPU multiply + lane reduction (no 1-lane MXU pass)
    val = jnp.sum(v1 * wv2, axis=-1, keepdims=True) + bv2                  # [TILE_B, 1]

    # lane-dense stores; global dueling mean is subtracted in the wrapper epilogue
    q_ref[...] = val + adv
    adv_ref[...] = adv


def _round_up(x, m):
    return (x + m - 1) // m * m


def pack_params(params):
    """Pack the 10 parameter tensors into two tile-aligned f32 slabs (2 DMAs/call)."""
    w1, b1, wa1, ba1, wa2, ba2, wv1, bv1, wv2, bv2 = params

    w_slab = jnp.zeros((W_ROWS, H_CAT), jnp.float32)
    w_slab = w_slab.at[_W1_R0:_W1_R0 + N_STATES, 0:H_FEAT].set(w1)
    w_slab = w_slab.at[_WCAT_R0:_WCAT_R0 + H_FEAT, 0:H_ADV].set(wa1)
    w_slab = w_slab.at[_WCAT_R0:_WCAT_R0 + H_FEAT, HA:HA + H_VAL].set(wv1)
    w_slab = w_slab.at[_WA2_R0:_WA2_R0 + H_ADV, 0:N_ACTIONS].set(wa2)

    v_slab = jnp.zeros((8, H_CAT), jnp.float32)
    v_slab = v_slab.at[_B1_ROW, 0:H_FEAT].set(b1)
    v_slab = v_slab.at[_BCAT_ROW, 0:H_ADV].set(ba1)
    v_slab = v_slab.at[_BCAT_ROW, HA:HA + H_VAL].set(bv1)
    v_slab = v_slab.at[_BA2_ROW, 0:N_ACTIONS].set(ba2)
    v_slab = v_slab.at[_WV2_ROW, 0:H_VAL].set(wv2[:, 0])
    v_slab = v_slab.at[_BV2_ROW, 0].set(bv2[0])
    return w_slab, v_slab


def net_forward(x, w_slab, v_slab):
    """Dueling-DQN forward. x: [B, 6] -> [B, 4] (float32)."""
    B = x.shape[0]
    tile_b = 128 if B >= 128 else _round_up(max(B, 1), 8)
    b_pad = _round_up(B, tile_b)
    n_tiles = b_pad // tile_b

    x_pad = jnp.zeros((b_pad, S_PAD), jnp.float32).at[:B, :N_STATES].set(
        x.astype(jnp.float32))

    grid_spec = pltpu.PrefetchScalarGridSpec(
        num_scalar_prefetch=0,
        grid=(n_tiles,),
        in_specs=[
            pl.BlockSpec((tile_b, S_PAD), lambda t: (t, 0)),
            # constant index_map -> slabs are DMA'd once and stay VMEM-resident
            pl.BlockSpec((W_ROWS, H_CAT), lambda t: (0, 0)),
            pl.BlockSpec((8, H_CAT), lambda t: (0, 0)),
        ],
        out_specs=[
            pl.BlockSpec((tile_b, A_PAD), lambda t: (t, 0)),
            pl.BlockSpec((tile_b, A_PAD), lambda t: (t, 0)),
        ],
    )

    q_raw, adv_raw = pl.pallas_call(
        net_kernel,
        out_shape=(
            jax.ShapeDtypeStruct((b_pad, A_PAD), jnp.float32),
            jax.ShapeDtypeStruct((b_pad, A_PAD), jnp.float32),
        ),
        grid_spec=grid_spec,
        compiler_params=pltpu.CompilerParams(
            # batch tiles are independent -> shard across both v7x TensorCores
            dimension_semantics=("parallel",),
        ),
    )(x_pad, w_slab, v_slab)

    # Dueling combine epilogue: advantage.mean() is a single scalar over the
    # REAL [B, 4] block (padded rows/lanes excluded) that couples all batch
    # tiles, so it is applied here rather than inside the parallel grid.
    adv = adv_raw[:B, :N_ACTIONS]
    return q_raw[:B, :N_ACTIONS] - jnp.mean(adv)


def init_params(key):
    """Deterministic synthetic parameters (uniform fan-in init, PyTorch-like scale).
    Weights are stored [in, out] (transpose of PyTorch's [out, in])."""
    def linear(key, fan_in, fan_out):
        kw, kb = jax.random.split(key)
        bound = 1.0 / jnp.sqrt(jnp.float32(fan_in))
        w = jax.random.uniform(kw, (fan_in, fan_out), jnp.float32, -bound, bound)
        b = jax.random.uniform(kb, (fan_out,), jnp.float32, -bound, bound)
        return w, b

    keys = jax.random.split(key, 5)
    w1, b1 = linear(keys[0], N_STATES, H_FEAT)
    wa1, ba1 = linear(keys[1], H_FEAT, H_ADV)
    wa2, ba2 = linear(keys[2], H_ADV, N_ACTIONS)
    wv1, bv1 = linear(keys[3], H_FEAT, H_VAL)
    wv2, bv2 = linear(keys[4], H_VAL, 1)
    return (w1, b1, wa1, ba1, wa2, ba2, wv1, bv1, wv2, bv2)


def net_reference(x, params):
    w1, b1, wa1, ba1, wa2, ba2, wv1, bv1, wv2, bv2 = params
    h = jnp.maximum(x @ w1 + b1, 0.0)
    a = jnp.maximum(h @ wa1 + ba1, 0.0)
    adv = a @ wa2 + ba2
    v = jnp.maximum(h @ wv1 + bv1, 0.0)
    val = v @ wv2 + bv2
    return val + adv - jnp.mean(adv)


if __name__ == "__main__":
    key = jax.random.PRNGKey(0)
    k_x, k_p = jax.random.split(key)

    B = 2
    x = jax.random.normal(k_x, (B, N_STATES), jnp.float32)
    params = init_params(k_p)

    # Pack once (per weight update in an RL loop); each forward then needs only
    # 3 DMAs (x + two slabs) instead of 11.
    w_slab, v_slab = pack_params(params)

    out = net_forward(x, w_slab, v_slab)
    out = jax.block_until_ready(out)

    ref = net_reference(x, params)
    assert out.shape == (B, N_ACTIONS)
    assert jnp.allclose(out, ref, atol=1e-3, rtol=1e-3), "Pallas output mismatch vs reference"

    print("KERNEL_OK")
</pallas_src>

<mosaic_0001>
module attributes {stable_mosaic.version = 11 : i64} {
  func.func @net_kernel(%arg0: i32, %arg1: memref<8x8xf32, #tpu.memory_space<vmem>>, %arg2: memref<264x640xf32, #tpu.memory_space<vmem>>, %arg3: memref<8x640xf32, #tpu.memory_space<vmem>>, %arg4: memref<8x128xf32, #tpu.memory_space<vmem>>, %arg5: memref<8x128xf32, #tpu.memory_space<vmem>>) attributes {dimension_semantics = [#tpu.dimension_semantics<parallel>], iteration_bounds = array<i64: 1>, scalar_prefetch = 0 : i64, scratch_operands = 0 : i64, tpu.core_type = #tpu.core_type<tc>, window_params = [{transform_indices = @transform_0, window_bounds = array<i64: 8, 8>}, {pipeline_mode = #tpu.pipeline_mode<synchronous>, transform_indices = @transform_1, window_bounds = array<i64: 264, 640>}, {pipeline_mode = #tpu.pipeline_mode<synchronous>, transform_indices = @transform_2, window_bounds = array<i64: 8, 640>}, {transform_indices = @transform_3, window_bounds = array<i64: 8, 128>}, {transform_indices = @transform_4, window_bounds = array<i64: 8, 128>}]} {
    %c0 = arith.constant 0 : index
    %c0_0 = arith.constant 0 : index
    %0 = vector.load %arg1[%c0, %c0_0] : memref<8x8xf32, #tpu.memory_space<vmem>>, vector<8x8xf32>
    %c0_1 = arith.constant 0 : index
    %c0_2 = arith.constant 0 : index
    %1 = vector.load %arg2[%c0_1, %c0_2] : memref<264x640xf32, #tpu.memory_space<vmem>>, vector<8x128xf32>
    %c8 = arith.constant 8 : index
    %c0_3 = arith.constant 0 : index
    %2 = vector.load %arg2[%c8, %c0_3] : memref<264x640xf32, #tpu.memory_space<vmem>>, vector<128x640xf32>
    %c136 = arith.constant 136 : index
    %c0_4 = arith.constant 0 : index
    %3 = vector.load %arg2[%c136, %c0_4] : memref<264x640xf32, #tpu.memory_space<vmem>>, vector<128x128xf32>
    %c0_5 = arith.constant 0 : index
    %c0_6 = arith.constant 0 : index
    %4 = vector.load %arg3[%c0_5, %c0_6] : memref<8x640xf32, #tpu.memory_space<vmem>>, vector<1x128xf32>
    %c1 = arith.constant 1 : index
    %c0_7 = arith.constant 0 : index
    %5 = vector.load %arg3[%c1, %c0_7] : memref<8x640xf32, #tpu.memory_space<vmem>>, vector<1x640xf32>
    %c2 = arith.constant 2 : index
    %c0_8 = arith.constant 0 : index
    %6 = vector.load %arg3[%c2, %c0_8] : memref<8x640xf32, #tpu.memory_space<vmem>>, vector<1x128xf32>
    %c3 = arith.constant 3 : index
    %c0_9 = arith.constant 0 : index
    %7 = vector.load %arg3[%c3, %c0_9] : memref<8x640xf32, #tpu.memory_space<vmem>>, vector<1x512xf32>
    %c4 = arith.constant 4 : index
    %c0_10 = arith.constant 0 : index
    %8 = vector.load %arg3[%c4, %c0_10] : memref<8x640xf32, #tpu.memory_space<vmem>>, vector<1x1xf32>
    %cst = arith.constant dense<0.000000e+00> : vector<8x128xf32>
    %9 = tpu.matmul %0, %1, %cst {dimension_numbers = #tpu.dot_dimension_numbers<[1], [0], [0], [1], [0, 0, 1, 1], [], []>} : vector<8x8xf32>, vector<8x128xf32>, vector<8x128xf32> -> vector<8x128xf32>
    %10 = vector.broadcast %4 : vector<1x128xf32> to vector<8x128xf32>
    %11 = arith.addf %9, %10 : vector<8x128xf32>
    %cst_11 = arith.constant 0.000000e+00 : f32
    %12 = vector.broadcast %cst_11 : f32 to vector<8x128xf32>
    %13 = arith.maximumf %11, %12 : vector<8x128xf32>
    %cst_12 = arith.constant dense<0.000000e+00> : vector<8x640xf32>
    %14 = tpu.matmul %13, %2, %cst_12 {dimension_numbers = #tpu.dot_dimension_numbers<[1], [0], [0], [1], [0, 0, 1, 1], [], []>} : vector<8x128xf32>, vector<128x640xf32>, vector<8x640xf32> -> vector<8x640xf32>
    %15 = vector.broadcast %5 : vector<1x640xf32> to vector<8x640xf32>
    %16 = arith.addf %14, %15 : vector<8x640xf32>
    %cst_13 = arith.constant 0.000000e+00 : f32
    %17 = vector.broadcast %cst_13 : f32 to vector<8x640xf32>
    %18 = arith.maximumf %16, %17 : vector<8x640xf32>
    %19 = vector.extract_strided_slice %18 {offsets = [0, 0], sizes = [8, 128], strides = [1, 1]} : vector<8x640xf32> to vector<8x128xf32>
    %20 = vector.extract_strided_slice %18 {offsets = [0, 128], sizes = [8, 512], strides = [1, 1]} : vector<8x640xf32> to vector<8x512xf32>
    %cst_14 = arith.constant dense<0.000000e+00> : vector<8x128xf32>
    %21 = tpu.matmul %19, %3, %cst_14 {dimension_numbers = #tpu.dot_dimension_numbers<[1], [0], [0], [1], [0, 0, 1, 1], [], []>} : vector<8x128xf32>, vector<128x128xf32>, vector<8x128xf32> -> vector<8x128xf32>
    %22 = vector.broadcast %6 : vector<1x128xf32> to vector<8x128xf32>
    %23 = arith.addf %21, %22 : vector<8x128xf32>
    %24 = vector.broadcast %7 : vector<1x512xf32> to vector<8x512xf32>
    %25 = arith.mulf %20, %24 : vector<8x512xf32>
    %cst_15 = arith.constant dense<0.000000e+00> : vector<8xf32>
    %26 = vector.multi_reduction <add>, %25, %cst_15 [1] : vector<8x512xf32> to vector<8xf32>
    %27 = vector.shape_cast %26 : vector<8xf32> to vector<8x1xf32>
    %28 = vector.broadcast %8 : vector<1x1xf32> to vector<8x1xf32>
    %29 = arith.addf %27, %28 : vector<8x1xf32>
    %30 = vector.broadcast %29 : vector<8x1xf32> to vector<8x128xf32>
    %31 = arith.addf %30, %23 : vector<8x128xf32>
    %c0_16 = arith.constant 0 : index
    %c0_17 = arith.constant 0 : index
    %32 = vector.load %arg4[%c0_16, %c0_17] : memref<8x128xf32, #tpu.memory_space<vmem>>, vector<8x128xf32>
    tpu.vector_store %arg4[%c0_16, %c0_17], %31 {strides = array<i32>} : memref<8x128xf32, #tpu.memory_space<vmem>>, vector<8x128xf32>,
    %c0_18 = arith.constant 0 : index
    %c0_19 = arith.constant 0 : index
    %33 = vector.load %arg5[%c0_18, %c0_19] : memref<8x128xf32, #tpu.memory_space<vmem>>, vector<8x128xf32>
    tpu.vector_store %arg5[%c0_18, %c0_19], %23 {strides = array<i32>} : memref<8x128xf32, #tpu.memory_space<vmem>>, vector<8x128xf32>,
    return
  }
  func.func @transform_0(%arg0: i32) -> (i32, i32) {
    %c0_i32 = arith.constant 0 : i32
    %c0_i32_0 = arith.constant 0 : i32
    return %arg0, %c0_i32 : i32, i32
  }
  func.func @transform_1(%arg0: i32) -> (i32, i32) {
    %c0_i32 = arith.constant 0 : i32
    %c0_i32_0 = arith.constant 0 : i32
    %c0_i32_1 = arith.constant 0 : i32
    return %c0_i32, %c0_i32_0 : i32, i32
  }
  func.func @transform_2(%arg0: i32) -> (i32, i32) {
    %c0_i32 = arith.constant 0 : i32
    %c0_i32_0 = arith.constant 0 : i32
    %c0_i32_1 = arith.constant 0 : i32
    return %c0_i32, %c0_i32_0 : i32, i32
  }
  func.func @transform_3(%arg0: i32) -> (i32, i32) {
    %c0_i32 = arith.constant 0 : i32
    %c0_i32_0 = arith.constant 0 : i32
    return %arg0, %c0_i32 : i32, i32
  }
  func.func @transform_4(%arg0: i32) -> (i32, i32) {
    %c0_i32 = arith.constant 0 : i32
    %c0_i32_0 = arith.constant 0 : i32
    return %arg0, %c0_i32 : i32, i32
  }
}

</mosaic_0001>

<llo_original>
// kernel: tpu_custom_call.1
$region0: #{tpu_custom_call.1}
  #allocation0 [shape = 'u32[]', space=smem, size = 0x4, offset = 0x4, fixed_abs, tag = 'smem constant byte address 0x4 - core index']
  #allocation1 [shape = 'u32[144,128]{1,0:T(1,128)}', space=vmem, size = 0x12000, scoped, tag = 'internal scratch']
  %s0 = inlined_call_operand.hbm [shape: f32[8,8], index: 0, kind: input, shape index: {}]
  %s1 = inlined_call_operand.hbm [shape: f32[264,640], index: 1, kind: input, shape index: {}]
  %s2 = inlined_call_operand.hbm [shape: f32[8,640], index: 2, kind: input, shape index: {}]
  %s3 = inlined_call_operand.hbm [shape: f32[8,128], index: 3, kind: output, shape index: {0}]
  %s4 = inlined_call_operand.hbm [shape: f32[8,128], index: 4, kind: output, shape index: {1}]
  %5 = xla_tuple %s3, %s4
  %s6 = sld [smem:[#allocation0]]
  $region42: #{tpu_custom_call.1} parent=0
    _
  %s8 = ssub.s32 1, %s6
  %s9 = scalar_select 0, %s8, %s6
  $region1: #{tpu_custom_call.1} parent=0
    #allocation2 [shape = 'u8[4096]{0}', space=vmem, size = 0x1000, scoped, tag = 'input window, operand 0, single buffered']
    #allocation3 [shape = 's32[1]{0}', space=sflag, size = 0x4, scoped, tag = 'scoped memory for tpu_custom_call.1']
    #allocation4 [shape = 's32[1]{0}', space=sflag, size = 0x4, scoped, tag = 'scoped memory for tpu_custom_call.1']
    #allocation5 [shape = 'u8[675840]{0}', space=vmem, size = 0xa5000, scoped, tag = 'input window, operand 1, single buffered']
    #allocation6 [shape = 's32[1]{0}', space=sflag, size = 0x4, scoped, tag = 'scoped memory for tpu_custom_call.1']
    #allocation7 [shape = 'u8[20480]{0}', space=vmem, size = 0x5000, scoped, tag = 'input window, operand 2, single buffered']
    #allocation8 [shape = 'u8[4096]{0}', space=vmem, size = 0x1000, scoped, tag = 'output window, operand 0, single buffered']
    #allocation9 [shape = 'u8[4096]{0}', space=vmem, size = 0x1000, scoped, tag = 'output window, operand 1, single buffered']
    #allocation10 [shape = 's32[1]{0}', space=sflag, size = 0x4, scoped, tag = 'scoped memory for tpu_custom_call.1']
    %10 = vsyncpa [#allocation3], 0
    %11 = vsyncpa [#allocation6], 0
    %12 = vsyncpa [#allocation4], 0
    %13 = vsyncpa [#allocation10], 0
    // Predicated region
    $region2: #{tpu_custom_call.1} parent=1 // pred_check
      _
    $region3: #{tpu_custom_call.1} parent=1 // pred_check_branch
      %15 = sbr.rel (0) target = $region5
    $region4: #{tpu_custom_call.1} parent=1 // pred_region
      %s17 = ssub.s32 128, 128
      %18 = vsyncadd [#allocation3], %s17
      %s20 = sshll.u32 [#allocation2], 4
      %s21 = int_to_ptr.vmem [resolvable:$true] %s20
      %23 = dma.hbm_to_vmem [thread:$0]  %s0, 128, %s21, [#allocation3]
    $region5: #{tpu_custom_call.1} parent=1 // pred_fallthru
      _
    // Predicated region
    $region6: #{tpu_custom_call.1} parent=1 // pred_check
      _
    $region7: #{tpu_custom_call.1} parent=1 // pred_check_branch
      %25 = sbr.rel (0) target = $region9
    $region8: #{tpu_custom_call.1} parent=1 // pred_region
      %s27 = ssub.s32 21120, 21120
      %28 = vsyncadd [#allocation6], %s27
      %s29 = sshll.u32 [#allocation5], 4
      %s30 = int_to_ptr.vmem [resolvable:$true] %s29
      %35 = dma.hbm_to_vmem [thread:$0]  %s1, 21120, %s30, [#allocation6], 640, 640, 40
    $region9: #{tpu_custom_call.1} parent=1 // pred_fallthru
      _
    // Predicated region
    $region10: #{tpu_custom_call.1} parent=1 // pred_check
      _
    $region11: #{tpu_custom_call.1} parent=1 // pred_check_branch
      %37 = sbr.rel (0) target = $region13
    $region12: #{tpu_custom_call.1} parent=1 // pred_region
      %s39 = ssub.s32 640, 640
      %40 = vsyncadd [#allocation6], %s39
      %s42 = sshll.u32 [#allocation7], 4
      %s43 = int_to_ptr.vmem [resolvable:$true] %s42
      %45 = dma.hbm_to_vmem [thread:$0]  %s2, 640, %s43, [#allocation6]
    $region13: #{tpu_custom_call.1} parent=1 // pred_fallthru
      _
    // Predicated region
    $region14: #{tpu_custom_call.1} parent=1 // pred_check
      _
    $region15: #{tpu_custom_call.1} parent=1 // pred_check_branch
      %47 = sbr.rel (0) target = $region17
    $region16: #{tpu_custom_call.1} parent=1 // pred_region
      %48 = dma.done [#allocation3], 128
    $region17: #{tpu_custom_call.1} parent=1 // pred_fallthru
      _
    // Predicated region
    $region18: #{tpu_custom_call.1} parent=1 // pred_check
      _
    $region19: #{tpu_custom_call.1} parent=1 // pred_check_branch
      %50 = sbr.rel (0) target = $region21
    $region20: #{tpu_custom_call.1} parent=1 // pred_region
      %51 = dma.done [#allocation6], 21120
    $region21: #{tpu_custom_call.1} parent=1 // pred_fallthru
      _
    // Predicated region
    $region22: #{tpu_custom_call.1} parent=1 // pred_check
      _
    $region23: #{tpu_custom_call.1} parent=1 // pred_check_branch
      %53 = sbr.rel (0) target = $region25
    $region24: #{tpu_custom_call.1} parent=1 // pred_region
      %54 = dma.done [#allocation6], 640
    $region25: #{tpu_custom_call.1} parent=1 // pred_fallthru
      _
    %v55 = vld [vmem:[#allocation2] sm:$0xff]
    %v56 = vld [vmem:[#allocation5] sm:$0xff]
    %v57 = vld [vmem:[#allocation5 + $0x28] sm:$0xff]
    %v58 = vld [vmem:[#allocation5 + $0x30] sm:$0xff]
    %v59 = vld [vmem:[#allocation5 + $0x38] sm:$0xff]
    %v60 = vld [vmem:[#allocation5 + $0x40] sm:$0xff]
    %v61 = vld [vmem:[#allocation5 + $0x48] sm:$0xff]
    %v62 = vld [vmem:[#allocation5 + $0x50] sm:$0xff]
    %v63 = vld [vmem:[#allocation5 + $0x58] sm:$0xff]
    %v64 = vld [vmem:[#allocation5 + $0x60] sm:$0xff]
    %v65 = vld [vmem:[#allocation5 + $0x68] sm:$0xff]
    %v66 = vld [vmem:[#allocation5 + $0x70] sm:$0xff]
    %v67 = vld [vmem:[#allocation5 + $0x78] sm:$0xff]
    %v68 = vld [vmem:[#allocation5 + $0x80] sm:$0xff]
    %v69 = vld [vmem:[#allocation5 + $0x88] sm:$0xff]
    %v70 = vld [vmem:[#allocation5 + $0x90] sm:$0xff]
    %v71 = vld [vmem:[#allocation5 + $0x98] sm:$0xff]
    %v72 = vld [vmem:[#allocation5 + $0xa0] sm:$0xff]
    %v73 = vld [vmem:[#allocation5 + $0xa8] sm:$0xff]
    %v74 = vld [vmem:[#allocation5 + $0xb0] sm:$0xff]
    %v75 = vld [vmem:[#allocation5 + $0xb8] sm:$0xff]
    %v76 = vld [vmem:[#allocation5 + $0xc0] sm:$0xff]
    %v77 = vld [vmem:[#allocation5 + $0xc8] sm:$0xff]
    %v78 = vld [vmem:[#allocation5 + $0xd0] sm:$0xff]
    %v79 = vld [vmem:[#allocation5 + $0xd8] sm:$0xff]
    %v80 = vld [vmem:[#allocation5 + $0xe0] sm:$0xff]
    %v81 = vld [vmem:[#allocation5 + $0xe8] sm:$0xff]
    %v82 = vld [vmem:[#allocation5 + $0xf0] sm:$0xff]
    %v83 = vld [vmem:[#allocation5 + $0xf8] sm:$0xff]
    %v84 = vld [vmem:[#allocation5 + $0x100] sm:$0xff]
    %v85 = vld [vmem:[#allocation5 + $0x108] sm:$0xff]
    %v86 = vld [vmem:[#allocation5 + $0x110] sm:$0xff]
    %v87 = vld [vmem:[#allocation5 + $0x118] sm:$0xff]
    %v88 = vld [vmem:[#allocation5 + $0x120] sm:$0xff]
    %v89 = vld [vmem:[#allocation5 + $0x128] sm:$0xff]
    %v90 = vld [vmem:[#allocation5 + $0x130] sm:$0xff]
    %v91 = vld [vmem:[#allocation5 + $0x138] sm:$0xff]
    %v92 = vld [vmem:[#allocation5 + $0x140] sm:$0xff]
    %v93 = vld [vmem:[#allocation5 + $0x148] sm:$0xff]
    %v94 = vld [vmem:[#allocation5 + $0x150] sm:$0xff]
    %v95 = vld [vmem:[#allocation5 + $0x158] sm:$0xff]
    %v96 = vld [vmem:[#allocation5 + $0x160] sm:$0xff]
    %v97 = vld [vmem:[#allocation5 + $0x168] sm:$0xff]
    %v98 = vld [vmem:[#allocation5 + $0x170] sm:$0xff]
    %v99 = vld [vmem:[#allocation5 + $0x178] sm:$0xff]
    %v100 = vld [vmem:[#allocation5 + $0x180] sm:$0xff]
    %v101 = vld [vmem:[#allocation5 + $0x188] sm:$0xff]
    %v102 = vld [vmem:[#allocation5 + $0x190] sm:$0xff]
    %v103 = vld [vmem:[#allocation5 + $0x198] sm:$0xff]
    %v104 = vld [vmem:[#allocation5 + $0x1a0] sm:$0xff]
    %v105 = vld [vmem:[#allocation5 + $0x1a8] sm:$0xff]
    %v106 = vld [vmem:[#allocation5 + $0x1b0] sm:$0xff]
    %v107 = vld [vmem:[#allocation5 + $0x1b8] sm:$0xff]
    %v108 = vld [vmem:[#allocation5 + $0x1c0] sm:$0xff]
    %v109 = vld [vmem:[#allocation5 + $0x1c8] sm:$0xff]
    %v110 = vld [vmem:[#allocation5 + $0x1d0] sm:$0xff]
    %v111 = vld [vmem:[#allocation5 + $0x1d8] sm:$0xff]
    %v112 = vld [vmem:[#allocation5 + $0x1e0] sm:$0xff]
    %v113 = vld [vmem:[#allocation5 + $0x1e8] sm:$0xff]
    %v114 = vld [vmem:[#allocation5 + $0x1f0] sm:$0xff]
    %v115 = vld [vmem:[#allocation5 + $0x1f8] sm:$0xff]
    %v116 = vld [vmem:[#allocation5 + $0x200] sm:$0xff]
    %v117 = vld [vmem:[#allocation5 + $0x208] sm:$0xff]
    %v118 = vld [vmem:[#allocation5 + $0x210] sm:$0xff]
    %v119 = vld [vmem:[#allocation5 + $0x218] sm:$0xff]
    %v120 = vld [vmem:[#allocation5 + $0x220] sm:$0xff]
    %v121 = vld [vmem:[#allocation5 + $0x228] sm:$0xff]
    %v122 = vld [vmem:[#allocation5 + $0x230] sm:$0xff]
    %v123 = vld [vmem:[#allocation5 + $0x238] sm:$0xff]
    %v124 = vld [vmem:[#allocation5 + $0x240] sm:$0xff]
    %v125 = vld [vmem:[#allocation5 + $0x248] sm:$0xff]
    %v126 = vld [vmem:[#allocation5 + $0x250] sm:$0xff]
    %v127 = vld [vmem:[#allocation5 + $0x258] sm:$0xff]
    %v128 = vld [vmem:[#allocation5 + $0x260] sm:$0xff]
    %v129 = vld [vmem:[#allocation5 + $0x268] sm:$0xff]
    %v130 = vld [vmem:[#allocation5 + $0x270] sm:$0xff]
    %v131 = vld [vmem:[#allocation5 + $0x278] sm:$0xff]
    %v132 = vld [vmem:[#allocation5 + $0x280] sm:$0xff]
    %v133 = vld [vmem:[#allocation5 + $0x288] sm:$0xff]
    %v134 = vld [vmem:[#allocation5 + $0x290] sm:$0xff]
    %v135 = vld [vmem:[#allocation5 + $0x298] sm:$0xff]
    %v136 = vld [vmem:[#allocation5 + $0x2a0] sm:$0xff]
    %v137 = vld [vmem:[#allocation5 + $0x2a8] sm:$0xff]
    %v138 = vld [vmem:[#allocation5 + $0x2d0] sm:$0xff]
    %v139 = vld [vmem:[#allocation5 + $0x2f8] sm:$0xff]
    %v140 = vld [vmem:[#allocation5 + $0x320] sm:$0xff]
    %v141 = vld [vmem:[#allocation5 + $0x348] sm:$0xff]
    %v142 = vld [vmem:[#allocation5 + $0x370] sm:$0xff]
    %v143 = vld [vmem:[#allocation5 + $0x398] sm:$0xff]
    %v144 = vld [vmem:[#allocation5 + $0x3c0] sm:$0xff]
    %v145 = vld [vmem:[#allocation5 + $0x3e8] sm:$0xff]
    %v146 = vld [vmem:[#allocation5 + $0x410] sm:$0xff]
    %v147 = vld [vmem:[#allocation5 + $0x438] sm:$0xff]
    %v148 = vld [vmem:[#allocation5 + $0x460] sm:$0xff]
    %v149 = vld [vmem:[#allocation5 + $0x488] sm:$0xff]
    %v150 = vld [vmem:[#allocation5 + $0x4b0] sm:$0xff]
    %v151 = vld [vmem:[#allocation5 + $0x4d8] sm:$0xff]
    %v152 = vld [vmem:[#allocation5 + $0x500] sm:$0xff]
    %v153 = vld [vmem:[#allocation7] ss:$0 sm:$0xff]
    %s154 = scalar_lea.vmem [#allocation7], 1
    %v155 = vld [vmem:[%s154] ss:$8 sm:$0xf]
    %v156 = vld [vmem:[%s154] ss:$8 sm:$0x10]
    %v157 = vor.u32 %v155, %v156
    %v158 = vld [vmem:[#allocation7 + $0x2] ss:$0 sm:$0xff]
    %s159 = scalar_lea.vmem [#allocation7], 3
    %v160 = vld [vmem:[%s159] ss:$8 sm:$0xf]
    %v161 = vld [vmem:[#allocation7 + $0x4] ss:$0 sm:$0xff]
    %vm162 = vcmask 64512
    %v164 = vsel %vm162, %v55, 0
    %166 = vmatprep.subr.mxu0 0.0
    %167 = vmatpush1.msra.mxu0 %v56
    %168 = vmatprep.subr.mxu0 0.0
    %169 = vmatpush1.msra.mxu0 0.0
    %170 = vmatprep.subr.mxu0 0.0
    %171 = vmatpush1.msra.mxu0 0.0
    %172 = vmatprep.subr.mxu0 0.0
    %173 = vmatpush1.msra.mxu0 0.0
    %174 = vmatprep.subr.mxu0 0.0
    %175 = vmatpush1.msra.mxu0 0.0
    %176 = vmatprep.subr.mxu0 0.0
    %177 = vmatpush1.msra.mxu0 0.0
    %178 = vmatprep.subr.mxu0 0.0
    %179 = vmatpush1.msra.mxu0 0.0
    %180 = vmatprep.subr.mxu0 0.0
    %181 = vmatpush1.msra.mxu0 0.0
    %182 = vmatprep.subr.mxu0 0.0
    %183 = vmatpush1.msra.mxu0 0.0
    %184 = vmatprep.subr.mxu0 0.0
    %185 = vmatpush1.msra.mxu0 0.0
    %186 = vmatprep.subr.mxu0 0.0
    %187 = vmatpush1.msra.mxu0 0.0
    %188 = vmatprep.subr.mxu0 0.0
    %189 = vmatpush1.msra.mxu0 0.0
    %190 = vmatprep.subr.mxu0 0.0
    %191 = vmatpush1.msra.mxu0 0.0
    %192 = vmatprep.subr.mxu0 0.0
    %193 = vmatpush1.msra.mxu0 0.0
    %194 = vmatprep.subr.mxu0 0.0
    %195 = vmatpush1.msra.mxu0 0.0
    %196 = vmatprep.subr.mxu0 0.0
    %197 = vmatpush1.msra.mxu0 0.0
    %198 = vmatprep.subr.mxu0 0.0
    %199 = vmatpush1.msra.mxu0 0.0
    %200 = vmatprep.subr.mxu0 0.0
    %201 = vmatpush1.msra.mxu0 0.0
    %202 = vmatprep.subr.mxu0 0.0
    %203 = vmatpush1.msra.mxu0 0.0
    %204 = vmatprep.subr.mxu0 0.0
    %205 = vmatpush1.msra.mxu0 0.0
    %206 = vmatprep.subr.mxu0 0.0
    %207 = vmatpush1.msra.mxu0 0.0
    %208 = vmatprep.subr.mxu0 0.0
    %209 = vmatpush1.msra.mxu0 0.0
    %210 = vmatprep.subr.mxu0 0.0
    %211 = vmatpush1.msra.mxu0 0.0
    %212 = vmatprep.subr.mxu0 0.0
    %213 = vmatpush1.msra.mxu0 0.0
    %214 = vmatprep.subr.mxu0 0.0
    %215 = vmatpush1.msra.mxu0 0.0
    %216 = vmatprep.subr.mxu0 0.0
    %217 = vmatpush1.msra.mxu0 0.0
    %218 = vmatprep.subr.mxu0 0.0
    %219 = vmatpush1.msra.mxu0 0.0
    %220 = vmatprep.subr.mxu0 0.0
    %221 = vmatpush1.msra.mxu0 0.0
    %222 = vmatprep.subr.mxu0 0.0
    %223 = vmatpush1.msra.mxu0 0.0
    %224 = vmatprep.subr.mxu0 0.0
    %225 = vmatpush1.msra.mxu0 0.0
    %226 = vmatprep.subr.mxu0 0.0
    %227 = vmatpush1.msra.mxu0 0.0
    %228 = vmatprep.subr.mxu0 0.0
    %229 = vmatpush1.msra.mxu0 0.0
    %230 = vmatprep.mubr.f32.mxu0 0.0
    %231 = vmatmul.mubr.f32.gmra.mrb[0].mxu0 %v164
    %v232 = vpop.f32.mrb[0].mxu0
    %v233 = vadd.f32 %v153, %v232
    %v234 = vpop.f32.mrb[0].mxu0
    %235 = vdwg.mxu0
    %v236 = vmax.f32 %v233, 0.0
    %v238 = vlaneseq
    %v239 = vshrl.u32 %v238, 7
    %v240 = vsub.s32 0, %v239
    %v241 = vrot.slane %v157, %v240
    %v242 = vlaneseq
    %v243 = vshrl.u32 %v242, 7
    %v244 = vsub.s32 1, %v243
    %v245 = vrot.slane %v157, %v244
    %v246 = vlaneseq
    %v247 = vshrl.u32 %v246, 7
    %v248 = vsub.s32 2, %v247
    %v249 = vrot.slane %v157, %v248
    %v250 = vlaneseq
    %v251 = vshrl.u32 %v250, 7
    %v252 = vsub.s32 3, %v251
    %v253 = vrot.slane %v157, %v252
    %v254 = vlaneseq
    %v255 = vshrl.u32 %v254, 7
    %v256 = vsub.s32 4, %v255
    %v257 = vrot.slane %v157, %v256
    %263 = vmatprep.subr.mxu0 %v58
    %264 = vmatpush1.msra.mxu0 %v57
    %265 = vmatprep.subr.mxu0 %v63
    %266 = vmatpush1.msra.mxu0 %v62
    %267 = vmatprep.subr.mxu0 %v68
    %268 = vmatpush1.msra.mxu0 %v67
    %269 = vmatprep.subr.mxu0 %v73
    %270 = vmatpush1.msra.mxu0 %v72
    %271 = vmatprep.subr.mxu0 %v78
    %272 = vmatpush1.msra.mxu0 %v77
    %273 = vmatprep.subr.mxu0 %v83
    %274 = vmatpush1.msra.mxu0 %v82
    %275 = vmatprep.subr.mxu0 %v88
    %276 = vmatpush1.msra.mxu0 %v87
    %277 = vmatprep.subr.mxu0 %v93
    %278 = vmatpush1.msra.mxu0 %v92
    %279 = vmatprep.subr.mxu0 %v98
    %280 = vmatpush1.msra.mxu0 %v97
    %281 = vmatprep.subr.mxu0 %v103
    %282 = vmatpush1.msra.mxu0 %v102
    %283 = vmatprep.subr.mxu0 %v108
    %284 = vmatpush1.msra.mxu0 %v107
    %285 = vmatprep.subr.mxu0 %v113
    %286 = vmatpush1.msra.mxu0 %v112
    %287 = vmatprep.subr.mxu0 %v118
    %288 = vmatpush1.msra.mxu0 %v117
    %289 = vmatprep.subr.mxu0 %v123
    %290 = vmatpush1.msra.mxu0 %v122
    %291 = vmatprep.subr.mxu0 %v128
    %292 = vmatpush1.msra.mxu0 %v127
    %293 = vmatprep.subr.mxu0 %v133
    %294 = vmatpush1.msra.mxu0 %v132
    %295 = vmatprep.subr.mxu0 0.0
    %296 = vmatpush1.msra.mxu0 0.0
    %297 = vmatprep.subr.mxu0 0.0
    %298 = vmatpush1.msra.mxu0 0.0
    %299 = vmatprep.subr.mxu0 0.0
    %300 = vmatpush1.msra.mxu0 0.0
    %301 = vmatprep.subr.mxu0 0.0
    %302 = vmatpush1.msra.mxu0 0.0
    %303 = vmatprep.subr.mxu0 0.0
    %304 = vmatpush1.msra.mxu0 0.0
    %305 = vmatprep.subr.mxu0 0.0
    %306 = vmatpush1.msra.mxu0 0.0
    %307 = vmatprep.subr.mxu0 0.0
    %308 = vmatpush1.msra.mxu0 0.0
    %309 = vmatprep.subr.mxu0 0.0
    %310 = vmatpush1.msra.mxu0 0.0
    %311 = vmatprep.subr.mxu0 0.0
    %312 = vmatpush1.msra.mxu0 0.0
    %313 = vmatprep.subr.mxu0 0.0
    %314 = vmatpush1.msra.mxu0 0.0
    %315 = vmatprep.subr.mxu0 0.0
    %316 = vmatpush1.msra.mxu0 0.0
    %317 = vmatprep.subr.mxu0 0.0
    %318 = vmatpush1.msra.mxu0 0.0
    %319 = vmatprep.subr.mxu0 0.0
    %320 = vmatpush1.msra.mxu0 0.0
    %321 = vmatprep.subr.mxu0 0.0
    %322 = vmatpush1.msra.mxu0 0.0
    %323 = vmatprep.subr.mxu0 0.0
    %324 = vmatpush1.msra.mxu0 0.0
    %325 = vmatprep.subr.mxu0 0.0
    %326 = vmatpush1.msra.mxu0 0.0
    %327 = vmatprep.mubr.f32.mxu0 0.0
    %328 = vmatmul.mubr.f32.gmra.mrb[0].mxu0 %v236
    %v329 = vpop.f32.mrb[0].mxu0
    %v330 = vadd.f32 %v241, %v329
    %v331 = vpop.f32.mrb[0].mxu0
    %v332 = vadd.f32 %v245, %v331
    %333 = vdwg.mxu0
    %334 = vmatprep.subr.mxu0 %v60
    %335 = vmatpush1.msra.mxu0 %v59
    %336 = vmatprep.subr.mxu0 %v65
    %337 = vmatpush1.msra.mxu0 %v64
    %338 = vmatprep.subr.mxu0 %v70
    %339 = vmatpush1.msra.mxu0 %v69
    %340 = vmatprep.subr.mxu0 %v75
    %341 = vmatpush1.msra.mxu0 %v74
    %342 = vmatprep.subr.mxu0 %v80
    %343 = vmatpush1.msra.mxu0 %v79
    %344 = vmatprep.subr.mxu0 %v85
    %345 = vmatpush1.msra.mxu0 %v84
    %346 = vmatprep.subr.mxu0 %v90
    %347 = vmatpush1.msra.mxu0 %v89
    %348 = vmatprep.subr.mxu0 %v95
    %349 = vmatpush1.msra.mxu0 %v94
    %350 = vmatprep.subr.mxu0 %v100
    %351 = vmatpush1.msra.mxu0 %v99
    %352 = vmatprep.subr.mxu0 %v105
    %353 = vmatpush1.msra.mxu0 %v104
    %354 = vmatprep.subr.mxu0 %v110
    %355 = vmatpush1.msra.mxu0 %v109
    %356 = vmatprep.subr.mxu0 %v115
    %357 = vmatpush1.msra.mxu0 %v114
    %358 = vmatprep.subr.mxu0 %v120
    %359 = vmatpush1.msra.mxu0 %v119
    %360 = vmatprep.subr.mxu0 %v125
    %361 = vmatpush1.msra.mxu0 %v124
    %362 = vmatprep.subr.mxu0 %v130
    %363 = vmatpush1.msra.mxu0 %v129
    %364 = vmatprep.subr.mxu0 %v135
    %365 = vmatpush1.msra.mxu0 %v134
    %366 = vmatprep.subr.mxu0 0.0
    %367 = vmatpush1.msra.mxu0 0.0
    %368 = vmatprep.subr.mxu0 0.0
    %369 = vmatpush1.msra.mxu0 0.0
    %370 = vmatprep.subr.mxu0 0.0
    %371 = vmatpush1.msra.mxu0 0.0
    %372 = vmatprep.subr.mxu0 0.0
    %373 = vmatpush1.msra.mxu0 0.0
    %374 = vmatprep.subr.mxu0 0.0
    %375 = vmatpush1.msra.mxu0 0.0
    %376 = vmatprep.subr.mxu0 0.0
    %377 = vmatpush1.msra.mxu0 0.0
    %378 = vmatprep.subr.mxu0 0.0
    %379 = vmatpush1.msra.mxu0 0.0
    %380 = vmatprep.subr.mxu0 0.0
    %381 = vmatpush1.msra.mxu0 0.0
    %382 = vmatprep.subr.mxu0 0.0
    %383 = vmatpush1.msra.mxu0 0.0
    %384 = vmatprep.subr.mxu0 0.0
    %385 = vmatpush1.msra.mxu0 0.0
    %386 = vmatprep.subr.mxu0 0.0
    %387 = vmatpush1.msra.mxu0 0.0
    %388 = vmatprep.subr.mxu0 0.0
    %389 = vmatpush1.msra.mxu0 0.0
    %390 = vmatprep.subr.mxu0 0.0
    %391 = vmatpush1.msra.mxu0 0.0
    %392 = vmatprep.subr.mxu0 0.0
    %393 = vmatpush1.msra.mxu0 0.0
    %394 = vmatprep.subr.mxu0 0.0
    %395 = vmatpush1.msra.mxu0 0.0
    %396 = vmatprep.subr.mxu0 0.0
    %397 = vmatpush1.msra.mxu0 0.0
    %398 = vmatprep.mubr.f32.mxu0 0.0
    %399 = vmatmul.mubr.f32.gmra.mrb[0].mxu0 %v236
    %v400 = vpop.f32.mrb[0].mxu0
    %v401 = vadd.f32 %v249, %v400
    %v402 = vpop.f32.mrb[0].mxu0
    %v403 = vadd.f32 %v253, %v402
    %404 = vdwg.mxu0
    %405 = vmatprep.subr.mxu0 0.0
    %406 = vmatpush1.msra.mxu0 %v61
    %407 = vmatprep.subr.mxu0 0.0
    %408 = vmatpush1.msra.mxu0 %v66
    %409 = vmatprep.subr.mxu0 0.0
    %410 = vmatpush1.msra.mxu0 %v71
    %411 = vmatprep.subr.mxu0 0.0
    %412 = vmatpush1.msra.mxu0 %v76
    %413 = vmatprep.subr.mxu0 0.0
    %414 = vmatpush1.msra.mxu0 %v81
    %415 = vmatprep.subr.mxu0 0.0
    %416 = vmatpush1.msra.mxu0 %v86
    %417 = vmatprep.subr.mxu0 0.0
    %418 = vmatpush1.msra.mxu0 %v91
    %419 = vmatprep.subr.mxu0 0.0
    %420 = vmatpush1.msra.mxu0 %v96
    %421 = vmatprep.subr.mxu0 0.0
    %422 = vmatpush1.msra.mxu0 %v101
    %423 = vmatprep.subr.mxu0 0.0
    %424 = vmatpush1.msra.mxu0 %v106
    %425 = vmatprep.subr.mxu0 0.0
    %426 = vmatpush1.msra.mxu0 %v111
    %427 = vmatprep.subr.mxu0 0.0
    %428 = vmatpush1.msra.mxu0 %v116
    %429 = vmatprep.subr.mxu0 0.0
    %430 = vmatpush1.msra.mxu0 %v121
    %431 = vmatprep.subr.mxu0 0.0
    %432 = vmatpush1.msra.mxu0 %v126
    %433 = vmatprep.subr.mxu0 0.0
    %434 = vmatpush1.msra.mxu0 %v131
    %435 = vmatprep.subr.mxu0 0.0
    %436 = vmatpush1.msra.mxu0 %v136
    %437 = vmatprep.subr.mxu0 0.0
    %438 = vmatpush1.msra.mxu0 0.0
    %439 = vmatprep.subr.mxu0 0.0
    %440 = vmatpush1.msra.mxu0 0.0
    %441 = vmatprep.subr.mxu0 0.0
    %442 = vmatpush1.msra.mxu0 0.0
    %443 = vmatprep.subr.mxu0 0.0
    %444 = vmatpush1.msra.mxu0 0.0
    %445 = vmatprep.subr.mxu0 0.0
    %446 = vmatpush1.msra.mxu0 0.0
    %447 = vmatprep.subr.mxu0 0.0
    %448 = vmatpush1.msra.mxu0 0.0
    %449 = vmatprep.subr.mxu0 0.0
    %450 = vmatpush1.msra.mxu0 0.0
    %451 = vmatprep.subr.mxu0 0.0
    %452 = vmatpush1.msra.mxu0 0.0
    %453 = vmatprep.subr.mxu0 0.0
    %454 = vmatpush1.msra.mxu0 0.0
    %455 = vmatprep.subr.mxu0 0.0
    %456 = vmatpush1.msra.mxu0 0.0
    %457 = vmatprep.subr.mxu0 0.0
    %458 = vmatpush1.msra.mxu0 0.0
    %459 = vmatprep.subr.mxu0 0.0
    %460 = vmatpush1.msra.mxu0 0.0
    %461 = vmatprep.subr.mxu0 0.0
    %462 = vmatpush1.msra.mxu0 0.0
    %463 = vmatprep.subr.mxu0 0.0
    %464 = vmatpush1.msra.mxu0 0.0
    %465 = vmatprep.subr.mxu0 0.0
    %466 = vmatpush1.msra.mxu0 0.0
    %467 = vmatprep.subr.mxu0 0.0
    %468 = vmatpush1.msra.mxu0 0.0
    %469 = vmatprep.mubr.f32.mxu0 0.0
    %470 = vmatmul.mubr.f32.gmra.mrb[0].mxu0 %v236
    %v471 = vpop.f32.mrb[0].mxu0
    %v472 = vadd.f32 %v257, %v471
    %v473 = vpop.f32.mrb[0].mxu0
    %474 = vdwg.mxu0
    %v475 = vmax.f32 %v330, 0.0
    %v476 = vmax.f32 %v332, 0.0
    %v477 = vmax.f32 %v401, 0.0
    %v478 = vmax.f32 %v403, 0.0
    %v479 = vmax.f32 %v472, 0.0
    %480 = vmatprep.subr.mxu0 0.0
    %481 = vmatpush1.msra.mxu0 %v137
    %482 = vmatprep.subr.mxu0 0.0
    %483 = vmatpush1.msra.mxu0 %v138
    %484 = vmatprep.subr.mxu0 0.0
    %485 = vmatpush1.msra.mxu0 %v139
    %486 = vmatprep.subr.mxu0 0.0
    %487 = vmatpush1.msra.mxu0 %v140
    %488 = vmatprep.subr.mxu0 0.0
    %489 = vmatpush1.msra.mxu0 %v141
    %490 = vmatprep.subr.mxu0 0.0
    %491 = vmatpush1.msra.mxu0 %v142
    %492 = vmatprep.subr.mxu0 0.0
    %493 = vmatpush1.msra.mxu0 %v143
    %494 = vmatprep.subr.mxu0 0.0
    %495 = vmatpush1.msra.mxu0 %v144
    %496 = vmatprep.subr.mxu0 0.0
    %497 = vmatpush1.msra.mxu0 %v145
    %498 = vmatprep.subr.mxu0 0.0
    %499 = vmatpush1.msra.mxu0 %v146
    %500 = vmatprep.subr.mxu0 0.0
    %501 = vmatpush1.msra.mxu0 %v147
    %502 = vmatprep.subr.mxu0 0.0
    %503 = vmatpush1.msra.mxu0 %v148
    %504 = vmatprep.subr.mxu0 0.0
    %505 = vmatpush1.msra.mxu0 %v149
    %506 = vmatprep.subr.mxu0 0.0
    %507 = vmatpush1.msra.mxu0 %v150
    %508 = vmatprep.subr.mxu0 0.0
    %509 = vmatpush1.msra.mxu0 %v151
    %510 = vmatprep.subr.mxu0 0.0
    %511 = vmatpush1.msra.mxu0 %v152
    %512 = vmatprep.subr.mxu0 0.0
    %513 = vmatpush1.msra.mxu0 0.0
    %514 = vmatprep.subr.mxu0 0.0
    %515 = vmatpush1.msra.mxu0 0.0
    %516 = vmatprep.subr.mxu0 0.0
    %517 = vmatpush1.msra.mxu0 0.0
    %518 = vmatprep.subr.mxu0 0.0
    %519 = vmatpush1.msra.mxu0 0.0
    %520 = vmatprep.subr.mxu0 0.0
    %521 = vmatpush1.msra.mxu0 0.0
    %522 = vmatprep.subr.mxu0 0.0
    %523 = vmatpush1.msra.mxu0 0.0
    %524 = vmatprep.subr.mxu0 0.0
    %525 = vmatpush1.msra.mxu0 0.0
    %526 = vmatprep.subr.mxu0 0.0
    %527 = vmatpush1.msra.mxu0 0.0
    %528 = vmatprep.subr.mxu0 0.0
    %529 = vmatpush1.msra.mxu0 0.0
    %530 = vmatprep.subr.mxu0 0.0
    %531 = vmatpush1.msra.mxu0 0.0
    %532 = vmatprep.subr.mxu0 0.0
    %533 = vmatpush1.msra.mxu0 0.0
    %534 = vmatprep.subr.mxu0 0.0
    %535 = vmatpush1.msra.mxu0 0.0
    %536 = vmatprep.subr.mxu0 0.0
    %537 = vmatpush1.msra.mxu0 0.0
    %538 = vmatprep.subr.mxu0 0.0
    %539 = vmatpush1.msra.mxu0 0.0
    %540 = vmatprep.subr.mxu0 0.0
    %541 = vmatpush1.msra.mxu0 0.0
    %542 = vmatprep.subr.mxu0 0.0
    %543 = vmatpush1.msra.mxu0 0.0
    %544 = vmatprep.mubr.f32.mxu0 0.0
    %545 = vmatmul.mubr.f32.gmra.mrb[0].mxu0 %v475
    %v546 = vpop.f32.mrb[0].mxu0
    %v547 = vadd.f32 %v158, %v546
    %v548 = vpop.f32.mrb[0].mxu0
    %549 = vdwg.mxu0
    %v551 = vlaneseq
    %v552 = vshrl.u32 %v551, 7
    %v553 = vsub.s32 0, %v552
    %v554 = vrot.slane %v160, %v553
    %v555 = vlaneseq
    %v556 = vshrl.u32 %v555, 7
    %v557 = vsub.s32 1, %v556
    %v558 = vrot.slane %v160, %v557
    %v559 = vlaneseq
    %v560 = vshrl.u32 %v559, 7
    %v561 = vsub.s32 2, %v560
    %v562 = vrot.slane %v160, %v561
    %v563 = vlaneseq
    %v564 = vshrl.u32 %v563, 7
    %v565 = vsub.s32 3, %v564
    %v566 = vrot.slane %v160, %v565
    %v571 = vmul.f32 %v476, %v554
    %v572 = vmul.f32 %v477, %v558
    %v573 = vmul.f32 %v478, %v562
    %v574 = vmul.f32 %v479, %v566
    %v575 = vadd.f32 %v571, %v572
    %v576 = vadd.f32 %v575, %v573
    %v577 = vadd.f32 %v576, %v574
    %578 = vadd.xlane.f32.xlu0 %v577
    %v579 = vpop.xlane.xlu0 %578
    %v580 = vadd.f32 %v579, %v161
    %582 = vset.pattern.permute.xlu0 0
    %583 = vperm.xlu0 %582, %v580
    %v584 = vpop.permute.xlu0 %583
    %v586 = vadd.f32 %v584, %v547
    %587 = vst [vmem:[#allocation8] sm:$0xff] %v586
    %588 = vst [vmem:[#allocation9] sm:$0xff] %v547
    // Predicated region
    $region26: #{tpu_custom_call.1} parent=1 // pred_check
      _
    $region27: #{tpu_custom_call.1} parent=1 // pred_check_branch
      %590 = sbr.rel (0) target = $region29
    $region28: #{tpu_custom_call.1} parent=1 // pred_region
      %s592 = ssub.s32 128, 128
      %593 = vsyncadd [#allocation4], %s592
      %s595 = sshll.u32 [#allocation8], 4
      %s596 = int_to_ptr.vmem [resolvable:$true] %s595
      %598 = dma.vmem_to_hbm [thread:$0]  %s596, 128, %s3, [#allocation4]
    $region29: #{tpu_custom_call.1} parent=1 // pred_fallthru
      _
    // Predicated region
    $region30: #{tpu_custom_call.1} parent=1 // pred_check
      _
    $region31: #{tpu_custom_call.1} parent=1 // pred_check_branch
      %600 = sbr.rel (0) target = $region33
    $region32: #{tpu_custom_call.1} parent=1 // pred_region
      %s602 = ssub.s32 128, 128
      %603 = vsyncadd [#allocation10], %s602
      %s605 = sshll.u32 [#allocation9], 4
      %s606 = int_to_ptr.vmem [resolvable:$true] %s605
      %608 = dma.vmem_to_hbm [thread:$0]  %s606, 128, %s4, [#allocation10]
    $region33: #{tpu_custom_call.1} parent=1 // pred_fallthru
      _
    // Predicated region
    $region34: #{tpu_custom_call.1} parent=1 // pred_check
      _
    $region35: #{tpu_custom_call.1} parent=1 // pred_check_branch
      %610 = sbr.rel (0) target = $region37
    $region36: #{tpu_custom_call.1} parent=1 // pred_region
      %611 = dma.done [#allocation4], 128
    $region37: #{tpu_custom_call.1} parent=1 // pred_fallthru
      _
    // Predicated region
    $region38: #{tpu_custom_call.1} parent=1 // pred_check
      _
    $region39: #{tpu_custom_call.1} parent=1 // pred_check_branch
      %613 = sbr.rel (0) target = $region41
    $region40: #{tpu_custom_call.1} parent=1 // pred_region
      %614 = dma.done [#allocation10], 128
    $region41: #{tpu_custom_call.1} parent=1 // pred_fallthru
      _
    %615 = vsyncpa [#allocation3], 1
    %616 = vsyncpa [#allocation6], 1
    %617 = vsyncpa [#allocation4], 1
    %618 = vsyncpa [#allocation10], 1

</llo_original>
